<compile_context>
chip_gen: v7x
topology: tpu7x:2x2x1
jax: 0.10.0
libtpu: 0.0.40
codegen_flags: <defaults>
</compile_context>

<pallas_src>
import functools

import jax
import jax.numpy as jnp
from jax.experimental import pallas as pl
from jax.experimental.pallas import tpu as pltpu

# Official VICReg default coefficients (deterministic, in-script).
SIM_COEFF = 25.0
STD_COEFF = 25.0
COV_COEFF = 1.0


def _round_up(v, m):
    return (v + m - 1) // m * m


# --------------------------------------------------------------------------------------
# Pass 1: streaming per-column statistics.
#   stats rows: 0 = sum(x), 1 = sum(x^2), 2 = sum(y), 3 = sum(y^2), 4 = sum((x-y)^2),
#   rows 5..7 unused (padding to an 8-row tile).
# --------------------------------------------------------------------------------------
def _stats_kernel(x_ref, y_ref, stats_ref):
    k = pl.program_id(1)                       # batch-reduction axis (innermost)

    @pl.when(k == 0)
    def _():
        stats_ref[...] = jnp.zeros_like(stats_ref)

    x = x_ref[...].astype(jnp.float32)         # (TN, TD)
    y = y_ref[...].astype(jnp.float32)
    d = x - y
    td = x.shape[1]
    upd = jnp.concatenate(
        [
            jnp.sum(x, axis=0, keepdims=True),
            jnp.sum(x * x, axis=0, keepdims=True),
            jnp.sum(y, axis=0, keepdims=True),
            jnp.sum(y * y, axis=0, keepdims=True),
            jnp.sum(d * d, axis=0, keepdims=True),
            jnp.zeros((3, td), jnp.float32),
        ],
        axis=0,
    )                                          # (8, TD)
    stats_ref[...] += upd


# --------------------------------------------------------------------------------------
# Pass 2: tiled centered Gram (covariance) Frobenius norms.
#   grid = (nI, nJ, nK); the (TD, TD) cov tile lives in VMEM scratch across the N axis.
#   Output block (8, 128) per (i, j): [0, 0] = ||cov_x tile||_F^2, [0, 1] = same for y.
# --------------------------------------------------------------------------------------
def _gram_kernel(xi_ref, xj_ref, yi_ref, yj_ref, si_ref, sj_ref, out_ref,
                 covx_acc, covy_acc, *, n_true, tn):
    k = pl.program_id(2)
    nk = pl.num_programs(2)

    @pl.when(k == 0)
    def _():
        covx_acc[...] = jnp.zeros_like(covx_acc)
        covy_acc[...] = jnp.zeros_like(covy_acc)

    inv_n = 1.0 / n_true
    # mask zero-padded batch rows (they would become -mean after centering)
    rows = jax.lax.broadcasted_iota(jnp.int32, (tn, 1), 0) + k * tn
    valid = (rows < n_true).astype(jnp.float32)          # (TN, 1)

    mxi = si_ref[0:1, :] * inv_n                          # (1, TD) column means
    mxj = sj_ref[0:1, :] * inv_n
    myi = si_ref[2:3, :] * inv_n
    myj = sj_ref[2:3, :] * inv_n

    dt = xi_ref.dtype                                     # keep native dtype on the MXU
    xi_c = ((xi_ref[...].astype(jnp.float32) - mxi) * valid).astype(dt)
    xj_c = ((xj_ref[...].astype(jnp.float32) - mxj) * valid).astype(dt)
    yi_c = ((yi_ref[...].astype(jnp.float32) - myi) * valid).astype(dt)
    yj_c = ((yj_ref[...].astype(jnp.float32) - myj) * valid).astype(dt)

    covx_acc[...] += jax.lax.dot_general(
        xi_c, xj_c, (((0,), (0,)), ((), ())), preferred_element_type=jnp.float32)
    covy_acc[...] += jax.lax.dot_general(
        yi_c, yj_c, (((0,), (0,)), ((), ())), preferred_element_type=jnp.float32)

    @pl.when(k == nk - 1)
    def _():
        inv_nm1 = 1.0 / (n_true - 1.0)
        sx = jnp.sum(covx_acc[...] * covx_acc[...]) * (inv_nm1 * inv_nm1)
        sy = jnp.sum(covy_acc[...] * covy_acc[...]) * (inv_nm1 * inv_nm1)
        r = jax.lax.broadcasted_iota(jnp.int32, (8, 128), 0)
        c = jax.lax.broadcasted_iota(jnp.int32, (8, 128), 1)
        out_ref[...] = jnp.where(
            (r == 0) & (c == 0), sx, jnp.where((r == 0) & (c == 1), sy, 0.0))


# --------------------------------------------------------------------------------------
# Wrapper
# --------------------------------------------------------------------------------------
@jax.jit
def vicreg_loss(x, y):
    N, D = x.shape
    assert y.shape == (N, D)
    if N < 2:
        raise ValueError("VICReg requires batch size >= 2 (unbiased variance).")

    # ---- tile sizes: lane tiles multiple of 128 (or full dim), VMEM-safe on v5e/v6e/v7x
    if D <= 512:
        TD = D
    elif D % 512 == 0:
        TD = 512
    else:
        TD = 256
    Dp = _round_up(D, TD)
    if N <= 256:
        TN = _round_up(N, 8)
        Np = TN
    else:
        TN = 256                               # >=256-deep contraction feeds the MXU
        Np = _round_up(N, TN)
    nI = nJ = Dp // TD
    nK = Np // TN

    # zero padding is exact for every quantity accumulated (sums over rows/cols)
    xp = jnp.pad(x, ((0, Np - N), (0, Dp - D)))
    yp = jnp.pad(y, ((0, Np - N), (0, Dp - D)))

    # ---- pass 1: per-column stats
    stats = pl.pallas_call(
        _stats_kernel,
        out_shape=jax.ShapeDtypeStruct((8, Dp), jnp.float32),
        grid_spec=pltpu.PrefetchScalarGridSpec(
            num_scalar_prefetch=0,
            grid=(nJ, nK),
            in_specs=[
                pl.BlockSpec((TN, TD), lambda j, k: (k, j)),
                pl.BlockSpec((TN, TD), lambda j, k: (k, j)),
            ],
            out_specs=pl.BlockSpec((8, TD), lambda j, k: (0, j)),
        ),
        compiler_params=pltpu.CompilerParams(
            dimension_semantics=("parallel", "arbitrary")),
    )(xp, yp)

    # ---- pass 2: tiled Gram / covariance Frobenius partial sums
    gram = pl.pallas_call(
        functools.partial(_gram_kernel, n_true=N, tn=TN),
        out_shape=jax.ShapeDtypeStruct((nI * 8, nJ * 128), jnp.float32),
        grid_spec=pltpu.PrefetchScalarGridSpec(
            num_scalar_prefetch=0,
            grid=(nI, nJ, nK),
            in_specs=[
                pl.BlockSpec((TN, TD), lambda i, j, k: (k, i)),   # x, i-side tile
                pl.BlockSpec((TN, TD), lambda i, j, k: (k, j)),   # x, j-side tile
                pl.BlockSpec((TN, TD), lambda i, j, k: (k, i)),   # y, i-side tile
                pl.BlockSpec((TN, TD), lambda i, j, k: (k, j)),   # y, j-side tile
                pl.BlockSpec((8, TD), lambda i, j, k: (0, i)),    # stats, i-chunk
                pl.BlockSpec((8, TD), lambda i, j, k: (0, j)),    # stats, j-chunk
            ],
            out_specs=pl.BlockSpec((8, 128), lambda i, j, k: (i, j)),
            scratch_shapes=[
                pltpu.VMEM((TD, TD), jnp.float32),
                pltpu.VMEM((TD, TD), jnp.float32),
            ],
        ),
        compiler_params=pltpu.CompilerParams(
            dimension_semantics=("parallel", "parallel", "arbitrary")),
    )(xp, xp, yp, yp, stats, stats)

    # ---- tiny O(D) scalar epilogue
    sum_x, ssq_x = stats[0, :D], stats[1, :D]
    sum_y, ssq_y = stats[2, :D], stats[3, :D]
    sqdiff = stats[4, :D]

    repr_loss = jnp.sum(sqdiff) / (N * D)

    var_x = jnp.maximum(ssq_x - sum_x * sum_x / N, 0.0) / (N - 1)
    var_y = jnp.maximum(ssq_y - sum_y * sum_y / N, 0.0) / (N - 1)
    std_x = jnp.sqrt(var_x + 1.0e-4)
    std_y = jnp.sqrt(var_y + 1.0e-4)
    std_loss = (jnp.mean(jnp.maximum(1.0 - std_x, 0.0)) / 2.0
                + jnp.mean(jnp.maximum(1.0 - std_y, 0.0)) / 2.0)

    frob_x = jnp.sum(gram[0::8, 0::128])      # sum_ij ||cov_x tile||_F^2
    frob_y = jnp.sum(gram[0::8, 1::128])
    # off-diag(C)^2 sum = ||C||_F^2 - sum(diag(C)^2); diag(cov) == unbiased variance
    cov_loss = ((frob_x - jnp.sum(var_x * var_x)) / D
                + (frob_y - jnp.sum(var_y * var_y)) / D)

    loss = SIM_COEFF * repr_loss + STD_COEFF * std_loss + COV_COEFF * cov_loss
    # aux mirrors the module's stored attributes:
    #   [positive_distance, log_prob, log_cond_prob]
    aux = jnp.stack([repr_loss, -cov_loss - std_loss, -repr_loss])
    return loss, aux


def _reference(x, y):
    """Pure-JAX reference mirroring the PyTorch forward, for sanity checking."""
    x = x.astype(jnp.float32)
    y = y.astype(jnp.float32)
    N, D = x.shape
    repr_loss = jnp.mean((x - y) ** 2)
    xc = x - x.mean(axis=0)
    yc = y - y.mean(axis=0)
    std_x = jnp.sqrt(xc.var(axis=0, ddof=1) + 1e-4)
    std_y = jnp.sqrt(yc.var(axis=0, ddof=1) + 1e-4)
    std_loss = jnp.mean(jax.nn.relu(1 - std_x)) / 2 + jnp.mean(jax.nn.relu(1 - std_y)) / 2
    cov_x = jnp.matmul(xc.T, xc, precision=jax.lax.Precision.HIGHEST) / (N - 1)
    cov_y = jnp.matmul(yc.T, yc, precision=jax.lax.Precision.HIGHEST) / (N - 1)
    off = 1.0 - jnp.eye(D)
    cov_loss = jnp.sum((cov_x * off) ** 2) / D + jnp.sum((cov_y * off) ** 2) / D
    return SIM_COEFF * repr_loss + STD_COEFF * std_loss + COV_COEFF * cov_loss


if __name__ == "__main__":
    # Primary small case consistent with the module's (batch, hidden_dim) inputs.
    key = jax.random.PRNGKey(0)
    kx, ky = jax.random.split(key)
    N, D = 8, 32
    x = jax.random.normal(kx, (N, D), dtype=jnp.float32)
    y = x + 0.1 * jax.random.normal(ky, (N, D), dtype=jnp.float32)

    loss, aux = vicreg_loss(x, y)
    loss = jax.block_until_ready(loss)
    aux = jax.block_until_ready(aux)
    ref = _reference(x, y)
    assert jnp.allclose(loss, ref, rtol=2e-4, atol=1e-4), (loss, ref)

    # Secondary case exercising padding + the multi-tile grid (nI=nJ=3, nK=2).
    k2x, k2y = jax.random.split(jax.random.PRNGKey(1))
    N2, D2 = 300, 640
    x2 = jax.random.normal(k2x, (N2, D2), dtype=jnp.float32)
    y2 = x2 + 0.1 * jax.random.normal(k2y, (N2, D2), dtype=jnp.float32)
    loss2, _ = vicreg_loss(x2, y2)
    loss2 = jax.block_until_ready(loss2)
    ref2 = _reference(x2, y2)
    assert jnp.allclose(loss2, ref2, rtol=2e-4, atol=1e-4), (loss2, ref2)

    print("KERNEL_OK")
</pallas_src>

<mosaic_0001>
module attributes {stable_mosaic.version = 11 : i64} {
  func.func @_stats_kernel(%arg0: i32, %arg1: i32, %arg2: memref<8x32xf32, #tpu.memory_space<vmem>>, %arg3: memref<8x32xf32, #tpu.memory_space<vmem>>, %arg4: memref<8x32xf32, #tpu.memory_space<vmem>>) attributes {dimension_semantics = [#tpu.dimension_semantics<parallel>, #tpu.dimension_semantics<arbitrary>], iteration_bounds = array<i64: 1, 1>, scalar_prefetch = 0 : i64, scratch_operands = 0 : i64, tpu.core_type = #tpu.core_type<tc>, window_params = [{transform_indices = @transform_0, window_bounds = array<i64: 8, 32>}, {transform_indices = @transform_1, window_bounds = array<i64: 8, 32>}, {transform_indices = @transform_2, window_bounds = array<i64: 8, 32>}]} {
    %c0_i32 = arith.constant 0 : i32
    %0 = arith.cmpi eq, %arg1, %c0_i32 : i32
    %1 = arith.extui %0 : i1 to i32
    %c0_i32_0 = arith.constant 0 : i32
    %2 = arith.cmpi ne, %1, %c0_i32_0 : i32
    scf.if %2 {
      %cst_13 = arith.constant 0.000000e+00 : f32
      %24 = vector.broadcast %cst_13 : f32 to vector<8x32xf32>
      %c0_14 = arith.constant 0 : index
      %c0_15 = arith.constant 0 : index
      %25 = vector.load %arg4[%c0_14, %c0_15] : memref<8x32xf32, #tpu.memory_space<vmem>>, vector<8x32xf32>
      tpu.vector_store %arg4[%c0_14, %c0_15], %24 {strides = array<i32>} : memref<8x32xf32, #tpu.memory_space<vmem>>, vector<8x32xf32>,
    } else {
    }
    %c0 = arith.constant 0 : index
    %c0_1 = arith.constant 0 : index
    %3 = vector.load %arg2[%c0, %c0_1] : memref<8x32xf32, #tpu.memory_space<vmem>>, vector<8x32xf32>
    %c0_2 = arith.constant 0 : index
    %c0_3 = arith.constant 0 : index
    %4 = vector.load %arg3[%c0_2, %c0_3] : memref<8x32xf32, #tpu.memory_space<vmem>>, vector<8x32xf32>
    %5 = arith.subf %3, %4 : vector<8x32xf32>
    %cst = arith.constant dense<0.000000e+00> : vector<32xf32>
    %6 = vector.multi_reduction <add>, %3, %cst [0] : vector<8x32xf32> to vector<32xf32>
    %7 = vector.shape_cast %6 : vector<32xf32> to vector<1x32xf32>
    %8 = arith.mulf %3, %3 : vector<8x32xf32>
    %cst_4 = arith.constant dense<0.000000e+00> : vector<32xf32>
    %9 = vector.multi_reduction <add>, %8, %cst_4 [0] : vector<8x32xf32> to vector<32xf32>
    %10 = vector.shape_cast %9 : vector<32xf32> to vector<1x32xf32>
    %cst_5 = arith.constant dense<0.000000e+00> : vector<32xf32>
    %11 = vector.multi_reduction <add>, %4, %cst_5 [0] : vector<8x32xf32> to vector<32xf32>
    %12 = vector.shape_cast %11 : vector<32xf32> to vector<1x32xf32>
    %13 = arith.mulf %4, %4 : vector<8x32xf32>
    %cst_6 = arith.constant dense<0.000000e+00> : vector<32xf32>
    %14 = vector.multi_reduction <add>, %13, %cst_6 [0] : vector<8x32xf32> to vector<32xf32>
    %15 = vector.shape_cast %14 : vector<32xf32> to vector<1x32xf32>
    %16 = arith.mulf %5, %5 : vector<8x32xf32>
    %cst_7 = arith.constant dense<0.000000e+00> : vector<32xf32>
    %17 = vector.multi_reduction <add>, %16, %cst_7 [0] : vector<8x32xf32> to vector<32xf32>
    %18 = vector.shape_cast %17 : vector<32xf32> to vector<1x32xf32>
    %cst_8 = arith.constant 0.000000e+00 : f32
    %19 = vector.broadcast %cst_8 : f32 to vector<3x32xf32>
    %20 = tpu.concatenate %7, %10, %12, %15, %18, %19 in 0 : vector<1x32xf32>, vector<1x32xf32>, vector<1x32xf32>, vector<1x32xf32>, vector<1x32xf32>, vector<3x32xf32> -> vector<8x32xf32>
    %c0_9 = arith.constant 0 : index
    %c0_10 = arith.constant 0 : index
    %21 = vector.load %arg4[%c0_9, %c0_10] : memref<8x32xf32, #tpu.memory_space<vmem>>, vector<8x32xf32>
    %22 = arith.addf %21, %20 : vector<8x32xf32>
    %c0_11 = arith.constant 0 : index
    %c0_12 = arith.constant 0 : index
    %23 = vector.load %arg4[%c0_11, %c0_12] : memref<8x32xf32, #tpu.memory_space<vmem>>, vector<8x32xf32>
    tpu.vector_store %arg4[%c0_11, %c0_12], %22 {strides = array<i32>} : memref<8x32xf32, #tpu.memory_space<vmem>>, vector<8x32xf32>,
    return
  }
  func.func @transform_0(%arg0: i32, %arg1: i32) -> (i32, i32) {
    %c0_i32 = arith.constant 0 : i32
    return %arg1, %arg0 : i32, i32
  }
  func.func @transform_1(%arg0: i32, %arg1: i32) -> (i32, i32) {
    %c0_i32 = arith.constant 0 : i32
    return %arg1, %arg0 : i32, i32
  }
  func.func @transform_2(%arg0: i32, %arg1: i32) -> (i32, i32) {
    %c0_i32 = arith.constant 0 : i32
    %c0_i32_0 = arith.constant 0 : i32
    return %c0_i32, %arg0 : i32, i32
  }
}

module attributes {stable_mosaic.version = 11 : i64} {
  func.func @_gram_kernel(%arg0: i32, %arg1: i32, %arg2: i32, %arg3: memref<8x32xf32, #tpu.memory_space<vmem>>, %arg4: memref<8x32xf32, #tpu.memory_space<vmem>>, %arg5: memref<8x32xf32, #tpu.memory_space<vmem>>, %arg6: memref<8x32xf32, #tpu.memory_space<vmem>>, %arg7: memref<8x32xf32, #tpu.memory_space<vmem>>, %arg8: memref<8x32xf32, #tpu.memory_space<vmem>>, %arg9: memref<8x128xf32, #tpu.memory_space<vmem>>, %arg10: memref<32x32xf32, #tpu.memory_space<vmem>>, %arg11: memref<32x32xf32, #tpu.memory_space<vmem>>) attributes {dimension_semantics = [#tpu.dimension_semantics<parallel>, #tpu.dimension_semantics<parallel>, #tpu.dimension_semantics<arbitrary>], iteration_bounds = array<i64: 1, 1, 1>, scalar_prefetch = 0 : i64, scratch_operands = 2 : i64, tpu.core_type = #tpu.core_type<tc>, window_params = [{transform_indices = @transform_0, window_bounds = array<i64: 8, 32>}, {transform_indices = @transform_1, window_bounds = array<i64: 8, 32>}, {transform_indices = @transform_2, window_bounds = array<i64: 8, 32>}, {transform_indices = @transform_3, window_bounds = array<i64: 8, 32>}, {transform_indices = @transform_4, window_bounds = array<i64: 8, 32>}, {transform_indices = @transform_5, window_bounds = array<i64: 8, 32>}, {transform_indices = @transform_6, window_bounds = array<i64: 8, 128>}]} {
    %c0_i32 = arith.constant 0 : i32
    %0 = arith.cmpi eq, %arg2, %c0_i32 : i32
    %1 = arith.extui %0 : i1 to i32
    %c0_i32_0 = arith.constant 0 : i32
    %2 = arith.cmpi ne, %1, %c0_i32_0 : i32
    scf.if %2 {
      %cst_31 = arith.constant 0.000000e+00 : f32
      %54 = vector.broadcast %cst_31 : f32 to vector<32x32xf32>
      %c0_32 = arith.constant 0 : index
      %c0_33 = arith.constant 0 : index
      %55 = vector.load %arg10[%c0_32, %c0_33] : memref<32x32xf32, #tpu.memory_space<vmem>>, vector<32x32xf32>
      tpu.vector_store %arg10[%c0_32, %c0_33], %54 {strides = array<i32>} : memref<32x32xf32, #tpu.memory_space<vmem>>, vector<32x32xf32>,
      %cst_34 = arith.constant 0.000000e+00 : f32
      %56 = vector.broadcast %cst_34 : f32 to vector<32x32xf32>
      %c0_35 = arith.constant 0 : index
      %c0_36 = arith.constant 0 : index
      %57 = vector.load %arg11[%c0_35, %c0_36] : memref<32x32xf32, #tpu.memory_space<vmem>>, vector<32x32xf32>
      tpu.vector_store %arg11[%c0_35, %c0_36], %56 {strides = array<i32>} : memref<32x32xf32, #tpu.memory_space<vmem>>, vector<32x32xf32>,
    } else {
    }
    %3 = tpu.iota {dimensions = array<i32: 0>} : vector<8x1xi32>
    %c8_i32 = arith.constant 8 : i32
    %4 = arith.muli %arg2, %c8_i32 : i32
    %5 = vector.broadcast %4 : i32 to vector<8x1xi32>
    %6 = arith.addi %3, %5 : vector<8x1xi32>
    %c8_i32_1 = arith.constant 8 : i32
    %7 = vector.broadcast %c8_i32_1 : i32 to vector<8x1xi32>
    %8 = arith.cmpi slt, %6, %7 : vector<8x1xi32>
    %9 = arith.extui %8 : vector<8x1xi1> to vector<8x1xi32>
    %10 = arith.sitofp %9 : vector<8x1xi32> to vector<8x1xf32>
    %c0 = arith.constant 0 : index
    %c0_2 = arith.constant 0 : index
    %11 = vector.load %arg7[%c0, %c0_2] : memref<8x32xf32, #tpu.memory_space<vmem>>, vector<1x32xf32>
    %cst = arith.constant 1.250000e-01 : f32
    %12 = vector.broadcast %cst : f32 to vector<1x32xf32>
    %13 = arith.mulf %11, %12 : vector<1x32xf32>
    %c0_3 = arith.constant 0 : index
    %c0_4 = arith.constant 0 : index
    %14 = vector.load %arg8[%c0_3, %c0_4] : memref<8x32xf32, #tpu.memory_space<vmem>>, vector<1x32xf32>
    %cst_5 = arith.constant 1.250000e-01 : f32
    %15 = vector.broadcast %cst_5 : f32 to vector<1x32xf32>
    %16 = arith.mulf %14, %15 : vector<1x32xf32>
    %c2 = arith.constant 2 : index
    %c0_6 = arith.constant 0 : index
    %17 = vector.load %arg7[%c2, %c0_6] : memref<8x32xf32, #tpu.memory_space<vmem>>, vector<1x32xf32>
    %cst_7 = arith.constant 1.250000e-01 : f32
    %18 = vector.broadcast %cst_7 : f32 to vector<1x32xf32>
    %19 = arith.mulf %17, %18 : vector<1x32xf32>
    %c2_8 = arith.constant 2 : index
    %c0_9 = arith.constant 0 : index
    %20 = vector.load %arg8[%c2_8, %c0_9] : memref<8x32xf32, #tpu.memory_space<vmem>>, vector<1x32xf32>
    %cst_10 = arith.constant 1.250000e-01 : f32
    %21 = vector.broadcast %cst_10 : f32 to vector<1x32xf32>
    %22 = arith.mulf %20, %21 : vector<1x32xf32>
    %c0_11 = arith.constant 0 : index
    %c0_12 = arith.constant 0 : index
    %23 = vector.load %arg3[%c0_11, %c0_12] : memref<8x32xf32, #tpu.memory_space<vmem>>, vector<8x32xf32>
    %24 = vector.broadcast %13 : vector<1x32xf32> to vector<8x32xf32>
    %25 = arith.subf %23, %24 : vector<8x32xf32>
    %26 = vector.broadcast %10 : vector<8x1xf32> to vector<8x32xf32>
    %27 = arith.mulf %25, %26 : vector<8x32xf32>
    %c0_13 = arith.constant 0 : index
    %c0_14 = arith.constant 0 : index
    %28 = vector.load %arg4[%c0_13, %c0_14] : memref<8x32xf32, #tpu.memory_space<vmem>>, vector<8x32xf32>
    %29 = vector.broadcast %16 : vector<1x32xf32> to vector<8x32xf32>
    %30 = arith.subf %28, %29 : vector<8x32xf32>
    %31 = vector.broadcast %10 : vector<8x1xf32> to vector<8x32xf32>
    %32 = arith.mulf %30, %31 : vector<8x32xf32>
    %c0_15 = arith.constant 0 : index
    %c0_16 = arith.constant 0 : index
    %33 = vector.load %arg5[%c0_15, %c0_16] : memref<8x32xf32, #tpu.memory_space<vmem>>, vector<8x32xf32>
    %34 = vector.broadcast %19 : vector<1x32xf32> to vector<8x32xf32>
    %35 = arith.subf %33, %34 : vector<8x32xf32>
    %36 = vector.broadcast %10 : vector<8x1xf32> to vector<8x32xf32>
    %37 = arith.mulf %35, %36 : vector<8x32xf32>
    %c0_17 = arith.constant 0 : index
    %c0_18 = arith.constant 0 : index
    %38 = vector.load %arg6[%c0_17, %c0_18] : memref<8x32xf32, #tpu.memory_space<vmem>>, vector<8x32xf32>
    %39 = vector.broadcast %22 : vector<1x32xf32> to vector<8x32xf32>
    %40 = arith.subf %38, %39 : vector<8x32xf32>
    %41 = vector.broadcast %10 : vector<8x1xf32> to vector<8x32xf32>
    %42 = arith.mulf %40, %41 : vector<8x32xf32>
    %c0_19 = arith.constant 0 : index
    %c0_20 = arith.constant 0 : index
    %43 = vector.load %arg10[%c0_19, %c0_20] : memref<32x32xf32, #tpu.memory_space<vmem>>, vector<32x32xf32>
    %cst_21 = arith.constant dense<0.000000e+00> : vector<32x32xf32>
    %44 = tpu.matmul %27, %32, %cst_21 {dimension_numbers = #tpu.dot_dimension_numbers<[0], [0], [1], [1], [0, 1, 1, 1], [], []>} : vector<8x32xf32>, vector<8x32xf32>, vector<32x32xf32> -> vector<32x32xf32>
    %45 = arith.addf %43, %44 : vector<32x32xf32>
    %c0_22 = arith.constant 0 : index
    %c0_23 = arith.constant 0 : index
    %46 = vector.load %arg10[%c0_22, %c0_23] : memref<32x32xf32, #tpu.memory_space<vmem>>, vector<32x32xf32>
    tpu.vector_store %arg10[%c0_22, %c0_23], %45 {strides = array<i32>} : memref<32x32xf32, #tpu.memory_space<vmem>>, vector<32x32xf32>,
    %c0_24 = arith.constant 0 : index
    %c0_25 = arith.constant 0 : index
    %47 = vector.load %arg11[%c0_24, %c0_25] : memref<32x32xf32, #tpu.memory_space<vmem>>, vector<32x32xf32>
    %cst_26 = arith.constant dense<0.000000e+00> : vector<32x32xf32>
    %48 = tpu.matmul %37, %42, %cst_26 {dimension_numbers = #tpu.dot_dimension_numbers<[0], [0], [1], [1], [0, 1, 1, 1], [], []>} : vector<8x32xf32>, vector<8x32xf32>, vector<32x32xf32> -> vector<32x32xf32>
    %49 = arith.addf %47, %48 : vector<32x32xf32>
    %c0_27 = arith.constant 0 : index
    %c0_28 = arith.constant 0 : index
    %50 = vector.load %arg11[%c0_27, %c0_28] : memref<32x32xf32, #tpu.memory_space<vmem>>, vector<32x32xf32>
    tpu.vector_store %arg11[%c0_27, %c0_28], %49 {strides = array<i32>} : memref<32x32xf32, #tpu.memory_space<vmem>>, vector<32x32xf32>,
    %c0_i32_29 = arith.constant 0 : i32
    %51 = arith.cmpi eq, %arg2, %c0_i32_29 : i32
    %52 = arith.extui %51 : i1 to i32
    %c0_i32_30 = arith.constant 0 : i32
    %53 = arith.cmpi ne, %52, %c0_i32_30 : i32
    scf.if %53 {
      %c0_31 = arith.constant 0 : index
      %c0_32 = arith.constant 0 : index
      %54 = vector.load %arg10[%c0_31, %c0_32] : memref<32x32xf32, #tpu.memory_space<vmem>>, vector<32x32xf32>
      %c0_33 = arith.constant 0 : index
      %c0_34 = arith.constant 0 : index
      %55 = vector.load %arg10[%c0_33, %c0_34] : memref<32x32xf32, #tpu.memory_space<vmem>>, vector<32x32xf32>
      %56 = arith.mulf %54, %55 : vector<32x32xf32>
      %57 = vector.shape_cast %56 : vector<32x32xf32> to vector<1x32x32xf32>
      %cst_35 = arith.constant dense<0.000000e+00> : vector<1xf32>
      %58 = vector.multi_reduction <add>, %57, %cst_35 [1, 2] : vector<1x32x32xf32> to vector<1xf32>
      %59 = vector.shape_cast %58 : vector<1xf32> to vector<1x1x1xf32>
      %60 = vector.extract %59[0, 0, 0] : f32 from vector<1x1x1xf32>
      %cst_36 = arith.constant 0.0204081628 : f32
      %61 = arith.mulf %60, %cst_36 : f32
      %c0_37 = arith.constant 0 : index
      %c0_38 = arith.constant 0 : index
      %62 = vector.load %arg11[%c0_37, %c0_38] : memref<32x32xf32, #tpu.memory_space<vmem>>, vector<32x32xf32>
      %c0_39 = arith.constant 0 : index
      %c0_40 = arith.constant 0 : index
      %63 = vector.load %arg11[%c0_39, %c0_40] : memref<32x32xf32, #tpu.memory_space<vmem>>, vector<32x32xf32>
      %64 = arith.mulf %62, %63 : vector<32x32xf32>
      %65 = vector.shape_cast %64 : vector<32x32xf32> to vector<1x32x32xf32>
      %cst_41 = arith.constant dense<0.000000e+00> : vector<1xf32>
      %66 = vector.multi_reduction <add>, %65, %cst_41 [1, 2] : vector<1x32x32xf32> to vector<1xf32>
      %67 = vector.shape_cast %66 : vector<1xf32> to vector<1x1x1xf32>
      %68 = vector.extract %67[0, 0, 0] : f32 from vector<1x1x1xf32>
      %cst_42 = arith.constant 0.0204081628 : f32
      %69 = arith.mulf %68, %cst_42 : f32
      %70 = tpu.iota {dimensions = array<i32: 0>} : vector<8x128xi32>
      %71 = tpu.iota {dimensions = array<i32: 1>} : vector<8x128xi32>
      %c0_i32_43 = arith.constant 0 : i32
      %72 = vector.broadcast %c0_i32_43 : i32 to vector<8x128xi32>
      %73 = arith.cmpi eq, %70, %72 : vector<8x128xi32>
      %c0_i32_44 = arith.constant 0 : i32
      %74 = vector.broadcast %c0_i32_44 : i32 to vector<8x128xi32>
      %75 = arith.cmpi eq, %71, %74 : vector<8x128xi32>
      %76 = arith.andi %73, %75 : vector<8x128xi1>
      %c0_i32_45 = arith.constant 0 : i32
      %77 = vector.broadcast %c0_i32_45 : i32 to vector<8x128xi32>
      %78 = arith.cmpi eq, %70, %77 : vector<8x128xi32>
      %c1_i32 = arith.constant 1 : i32
      %79 = vector.broadcast %c1_i32 : i32 to vector<8x128xi32>
      %80 = arith.cmpi eq, %71, %79 : vector<8x128xi32>
      %81 = arith.andi %78, %80 : vector<8x128xi1>
      %cst_46 = arith.constant 0.000000e+00 : f32
      %82 = vector.broadcast %69 : f32 to vector<8x128xf32>
      %83 = vector.broadcast %cst_46 : f32 to vector<8x128xf32>
      %84 = arith.select %81, %82, %83 : vector<8x128xi1>, vector<8x128xf32>
      %85 = vector.broadcast %61 : f32 to vector<8x128xf32>
      %86 = arith.select %76, %85, %84 : vector<8x128xi1>, vector<8x128xf32>
      %c0_47 = arith.constant 0 : index
      %c0_48 = arith.constant 0 : index
      %87 = vector.load %arg9[%c0_47, %c0_48] : memref<8x128xf32, #tpu.memory_space<vmem>>, vector<8x128xf32>
      tpu.vector_store %arg9[%c0_47, %c0_48], %86 {strides = array<i32>} : memref<8x128xf32, #tpu.memory_space<vmem>>, vector<8x128xf32>,
    } else {
    }
    return
  }
  func.func @transform_0(%arg0: i32, %arg1: i32, %arg2: i32) -> (i32, i32) {
    %c0_i32 = arith.constant 0 : i32
    return %arg2, %arg0 : i32, i32
  }
  func.func @transform_1(%arg0: i32, %arg1: i32, %arg2: i32) -> (i32, i32) {
    %c0_i32 = arith.constant 0 : i32
    return %arg2, %arg1 : i32, i32
  }
  func.func @transform_2(%arg0: i32, %arg1: i32, %arg2: i32) -> (i32, i32) {
    %c0_i32 = arith.constant 0 : i32
    return %arg2, %arg0 : i32, i32
  }
  func.func @transform_3(%arg0: i32, %arg1: i32, %arg2: i32) -> (i32, i32) {
    %c0_i32 = arith.constant 0 : i32
    return %arg2, %arg1 : i32, i32
  }
  func.func @transform_4(%arg0: i32, %arg1: i32, %arg2: i32) -> (i32, i32) {
    %c0_i32 = arith.constant 0 : i32
    %c0_i32_0 = arith.constant 0 : i32
    return %c0_i32, %arg0 : i32, i32
  }
  func.func @transform_5(%arg0: i32, %arg1: i32, %arg2: i32) -> (i32, i32) {
    %c0_i32 = arith.constant 0 : i32
    %c0_i32_0 = arith.constant 0 : i32
    return %c0_i32, %arg1 : i32, i32
  }
  func.func @transform_6(%arg0: i32, %arg1: i32, %arg2: i32) -> (i32, i32) {
    %c0_i32 = arith.constant 0 : i32
    return %arg0, %arg1 : i32, i32
  }
}

</mosaic_0001>

<llo_original>
// kernel: vicreg_loss.2
$region0: #{vicreg_loss.2}
  #allocation0 [shape = 'u32[]', space=smem, size = 0x4, offset = 0x4, fixed_abs, tag = 'smem constant byte address 0x4 - core index']
  #allocation1 [shape = 'u32[144,128]{1,0:T(1,128)}', space=vmem, size = 0x12000, scoped, tag = 'internal scratch']
  %s0 = inlined_call_operand.hbm [shape: f32[8,32], index: 0, kind: input, shape index: {}]
  %s1 = inlined_call_operand.hbm [shape: f32[8,32], index: 1, kind: input, shape index: {}]
  %s2 = inlined_call_operand.vmem [shape: f32[8,32], index: 2, kind: output, shape index: {}]
  %s3 = sld [smem:[#allocation0]]
  $region30: #{vicreg_loss.2} parent=0
    _
  %s5 = ssub.s32 1, %s3
  %s6 = scalar_select 0, %s5, %s3
  $region1: #{vicreg_loss.2} parent=0
    #allocation2 [shape = 'u8[4096]{0}', space=vmem, size = 0x1000, scoped, tag = 'input window, operand 0, single buffered']
    #allocation3 [shape = 's32[1]{0}', space=sflag, size = 0x4, scoped, tag = 'scoped memory for vicreg_loss.2']
    #allocation4 [shape = 'u8[4096]{0}', space=vmem, size = 0x1000, scoped, tag = 'input window, operand 1, single buffered']
    #allocation5 [shape = 's32[1]{0}', space=sflag, size = 0x4, scoped, tag = 'scoped memory for vicreg_loss.2']
    %7 = vsyncpa [#allocation3], 0
    %8 = vsyncpa [#allocation5], 0
    // Predicated region
    $region2: #{vicreg_loss.2} parent=1 // pred_check
      _
    $region3: #{vicreg_loss.2} parent=1 // pred_check_branch
      %10 = sbr.rel (0) target = $region5
    $region4: #{vicreg_loss.2} parent=1 // pred_region
      %s12 = ssub.s32 128, 128
      %13 = vsyncadd [#allocation3], %s12
      %s15 = sshll.u32 [#allocation2], 4
      %s16 = int_to_ptr.vmem [resolvable:$true] %s15
      %18 = dma.hbm_to_vmem [thread:$0]  %s0, 128, %s16, [#allocation3]
    $region5: #{vicreg_loss.2} parent=1 // pred_fallthru
      _
    // Predicated region
    $region6: #{vicreg_loss.2} parent=1 // pred_check
      _
    $region7: #{vicreg_loss.2} parent=1 // pred_check_branch
      %20 = sbr.rel (0) target = $region9
    $region8: #{vicreg_loss.2} parent=1 // pred_region
      %s22 = ssub.s32 128, 128
      %23 = vsyncadd [#allocation5], %s22
      %s25 = sshll.u32 [#allocation4], 4
      %s26 = int_to_ptr.vmem [resolvable:$true] %s25
      %28 = dma.hbm_to_vmem [thread:$0]  %s1, 128, %s26, [#allocation5]
    $region9: #{vicreg_loss.2} parent=1 // pred_fallthru
      _
    // Predicated region
    $region10: #{vicreg_loss.2} parent=1 // pred_check
      _
    $region11: #{vicreg_loss.2} parent=1 // pred_check_branch
      %30 = sbr.rel (0) target = $region13
    $region12: #{vicreg_loss.2} parent=1 // pred_region
      %31 = dma.done [#allocation3], 128
    $region13: #{vicreg_loss.2} parent=1 // pred_fallthru
      _
    // Predicated region
    $region14: #{vicreg_loss.2} parent=1 // pred_check
      _
    $region15: #{vicreg_loss.2} parent=1 // pred_check_branch
      %33 = sbr.rel (0) target = $region17
    $region16: #{vicreg_loss.2} parent=1 // pred_region
      %34 = dma.done [#allocation5], 128
    $region17: #{vicreg_loss.2} parent=1 // pred_fallthru
      _
    %p35 = scmp.eq.s32.totalorder 0, 0
    // Predicated region
    $region18: #{vicreg_loss.2} parent=1 // pred_check
      %p36 = pneg %p35
    $region19: #{vicreg_loss.2} parent=1 // pred_check_branch
      %38 = sbr.rel (%p36) target = $region21
    $region20: #{vicreg_loss.2} parent=1 // pred_region
      %vm39 = vcmask 261120
      %40 = vst.msk [vmem:[%s2] sm:$0xff] %vm39, 0.0
    $region21: #{vicreg_loss.2} parent=1 // pred_fallthru
      _
    %v41 = vld [vmem:[#allocation2] sm:$0xff]
    %v42 = vld [vmem:[#allocation4] sm:$0xff]
    %v43 = vsub.f32 %v41, %v42
    %vm44 = vcmask 261120
    %v45 = vsel %vm44, %v41, 0.0
    %v46 = vrot.slane %v45, 4
    %v47 = vadd.f32 %v45, %v46
    %v48 = vrot.slane %v47, 2
    %v49 = vadd.f32 %v47, %v48
    %v50 = vrot.slane %v49, 1
    %v51 = vadd.f32 %v49, %v50
    %v52 = vmul.f32 %v41, %v41
    %v53 = vsel %vm44, %v52, 0.0
    %v54 = vrot.slane %v53, 4
    %v55 = vadd.f32 %v53, %v54
    %v56 = vrot.slane %v55, 2
    %v57 = vadd.f32 %v55, %v56
    %v58 = vrot.slane %v57, 1
    %v59 = vadd.f32 %v57, %v58
    %v60 = vsel %vm44, %v42, 0.0
    %v61 = vrot.slane %v60, 4
    %v62 = vadd.f32 %v60, %v61
    %v63 = vrot.slane %v62, 2
    %v64 = vadd.f32 %v62, %v63
    %v65 = vrot.slane %v64, 1
    %v66 = vadd.f32 %v64, %v65
    %v67 = vmul.f32 %v42, %v42
    %v68 = vsel %vm44, %v67, 0.0
    %v69 = vrot.slane %v68, 4
    %v70 = vadd.f32 %v68, %v69
    %v71 = vrot.slane %v70, 2
    %v72 = vadd.f32 %v70, %v71
    %v73 = vrot.slane %v72, 1
    %v74 = vadd.f32 %v72, %v73
    %v75 = vmul.f32 %v43, %v43
    %v76 = vsel %vm44, %v75, 0.0
    %v77 = vrot.slane %v76, 4
    %v78 = vadd.f32 %v76, %v77
    %v79 = vrot.slane %v78, 2
    %v80 = vadd.f32 %v78, %v79
    %v81 = vrot.slane %v80, 1
    %v82 = vadd.f32 %v80, %v81
    %vm83 = vcmask 1040384
    %v84 = vsel %vm83, %v51, %v59
    %vm85 = vcmask 1041408
    %v86 = vsel %vm85, %v84, %v66
    %vm87 = vcmask 1042432
    %v88 = vsel %vm87, %v86, %v74
    %vm89 = vcmask 1043456
    %v90 = vsel %vm89, %v88, %v82
    %vm91 = vcmask 1044480
    %v92 = vsel %vm91, %v90, 0.0
    %v93 = vld [vmem:[%s2] sm:$0xff]
    %v94 = vadd.f32 %v93, %v92
    %95 = vst.msk [vmem:[%s2] sm:$0xff] %vm44, %v94
    // Predicated region
    $region22: #{vicreg_loss.2} parent=1 // pred_check
      _
    $region23: #{vicreg_loss.2} parent=1 // pred_check_branch
      %97 = sbr.rel (0) target = $region25
    $region24: #{vicreg_loss.2} parent=1 // pred_region
      _
    $region25: #{vicreg_loss.2} parent=1 // pred_fallthru
      _
    // Predicated region
    $region26: #{vicreg_loss.2} parent=1 // pred_check
      _
    $region27: #{vicreg_loss.2} parent=1 // pred_check_branch
      %99 = sbr.rel (0) target = $region29
    $region28: #{vicreg_loss.2} parent=1 // pred_region
      _
    $region29: #{vicreg_loss.2} parent=1 // pred_fallthru
      _
    %100 = vsyncpa [#allocation3], 1
    %101 = vsyncpa [#allocation5], 1

// kernel: vicreg_loss.3
$region0: #{vicreg_loss.3}
  #allocation0 [shape = 'u32[]', space=smem, size = 0x4, offset = 0x4, fixed_abs, tag = 'smem constant byte address 0x4 - core index']
  #allocation1 [shape = 'u32[144,128]{1,0:T(1,128)}', space=vmem, size = 0x12000, scoped, tag = 'internal scratch']
  #allocation2 [shape = 'f32[32,32]{1,0:T(8,128)}', space=vmem, size = 0x4000, scoped, tag = 'scratch operand']
  #allocation3 [shape = 'f32[32,32]{1,0:T(8,128)}', space=vmem, size = 0x4000, scoped, tag = 'scratch operand']
  %s0 = inlined_call_operand.vmem [shape: f32[8,32], index: 0, kind: input, shape index: {}, may-alias: {0,1}]
  %s1 = inlined_call_operand.vmem [shape: f32[8,32], index: 1, kind: input, shape index: {}, may-alias: {0,1}]
  %s2 = inlined_call_operand.vmem [shape: f32[8,32], index: 2, kind: input, shape index: {}, may-alias: {2,3}]
  %s3 = inlined_call_operand.vmem [shape: f32[8,32], index: 3, kind: input, shape index: {}, may-alias: {2,3}]
  %s4 = inlined_call_operand.vmem [shape: f32[8,32], index: 4, kind: input, shape index: {}, may-alias: {4,5}]
  %s5 = inlined_call_operand.vmem [shape: f32[8,32], index: 5, kind: input, shape index: {}, may-alias: {4,5}]
  %s6 = inlined_call_operand.vmem [shape: f32[8,128], index: 6, kind: output, shape index: {}]
  %s7 = sld [smem:[#allocation0]]
  $region42: #{vicreg_loss.3} parent=0
    _
  %s9 = ssub.s32 1, %s7
  %s10 = scalar_select 0, %s9, %s7
  // Predicated region
  $region2: #{vicreg_loss.3} parent=0 // pred_check
    _
  $region3: #{vicreg_loss.3} parent=0 // pred_check_branch
    %12 = sbr.rel (0) target = $region5
  $region4: #{vicreg_loss.3} parent=0 // pred_region
    _
  $region5: #{vicreg_loss.3} parent=0 // pred_fallthru
    _
  // Predicated region
  $region6: #{vicreg_loss.3} parent=0 // pred_check
    _
  $region7: #{vicreg_loss.3} parent=0 // pred_check_branch
    %14 = sbr.rel (0) target = $region9
  $region8: #{vicreg_loss.3} parent=0 // pred_region
    _
  $region9: #{vicreg_loss.3} parent=0 // pred_fallthru
    _
  // Predicated region
  $region10: #{vicreg_loss.3} parent=0 // pred_check
    _
  $region11: #{vicreg_loss.3} parent=0 // pred_check_branch
    %16 = sbr.rel (0) target = $region13
  $region12: #{vicreg_loss.3} parent=0 // pred_region
    _
  $region13: #{vicreg_loss.3} parent=0 // pred_fallthru
    _
  // Predicated region
  $region14: #{vicreg_loss.3} parent=0 // pred_check
    _
  $region15: #{vicreg_loss.3} parent=0 // pred_check_branch
    %18 = sbr.rel (0) target = $region17
  $region16: #{vicreg_loss.3} parent=0 // pred_region
    _
  $region17: #{vicreg_loss.3} parent=0 // pred_fallthru
    _
  // Predicated region
  $region18: #{vicreg_loss.3} parent=0 // pred_check
    _
  $region19: #{vicreg_loss.3} parent=0 // pred_check_branch
    %20 = sbr.rel (0) target = $region21
  $region20: #{vicreg_loss.3} parent=0 // pred_region
    _
  $region21: #{vicreg_loss.3} parent=0 // pred_fallthru
    _
  // Predicated region
  $region22: #{vicreg_loss.3} parent=0 // pred_check
    _
  $region23: #{vicreg_loss.3} parent=0 // pred_check_branch
    %22 = sbr.rel (0) target = $region25
  $region24: #{vicreg_loss.3} parent=0 // pred_region
    _
  $region25: #{vicreg_loss.3} parent=0 // pred_fallthru
    _
  %p23 = scmp.eq.s32.totalorder 0, 0
  // Predicated region
  $region26: #{vicreg_loss.3} parent=0 // pred_check
    %p24 = pneg %p23
  $region27: #{vicreg_loss.3} parent=0 // pred_check_branch
    %26 = sbr.rel (%p24) target = $region29
  $region28: #{vicreg_loss.3} parent=0 // pred_region
    %vm27 = vcmask 261120
    %28 = vst.msk [vmem:[#allocation2] sm:$0xff] %vm27, 0.0
    %29 = vst.msk [vmem:[#allocation2 + $0x8] sm:$0xff] %vm27, 0.0
    %30 = vst.msk [vmem:[#allocation2 + $0x10] sm:$0xff] %vm27, 0.0
    %31 = vst.msk [vmem:[#allocation2 + $0x18] sm:$0xff] %vm27, 0.0
    %32 = vst.msk [vmem:[#allocation3] sm:$0xff] %vm27, 0.0
    %33 = vst.msk [vmem:[#allocation3 + $0x8] sm:$0xff] %vm27, 0.0
    %34 = vst.msk [vmem:[#allocation3 + $0x10] sm:$0xff] %vm27, 0.0
    %35 = vst.msk [vmem:[#allocation3 + $0x18] sm:$0xff] %vm27, 0.0
  $region29: #{vicreg_loss.3} parent=0 // pred_fallthru
    _
  %v36 = vlaneseq
  %v37 = vshrl.u32 %v36, 7
  %s38 = smul.u32 0, 8
  %v39 = vstv %s38
  %v40 = vadd.s32 %v37, %v39
  %vm41 = vcmp.lt.s32.totalorder %v40, 8
  %v42 = vsel %vm41, 1, 0
  %v43 = vcvt.s32.f32 %v42
  %v44 = vld [vmem:[%s4] sm:$0x1]
  %v45 = vmul.f32 %v44, 0.125
  %v46 = vld [vmem:[%s5] sm:$0x1]
  %v47 = vmul.f32 %v46, 0.125
  %v48 = vld [vmem:[%s4 + $0x2] sm:$0x1]
  %v49 = vmul.f32 %v48, 0.125
  %v50 = vld [vmem:[%s5 + $0x2] sm:$0x1]
  %v51 = vmul.f32 %v50, 0.125
  %v52 = vld [vmem:[%s0] sm:$0xff]
  %v53 = vlaneseq
  %v54 = vshrl.u32 %v53, 7
  %v55 = vsub.s32 0, %v54
  %v56 = vrot.slane %v45, %v55
  %v57 = vsub.f32 %v52, %v56
  %v58 = vmul.f32 %v57, %v43
  %v59 = vld [vmem:[%s1] sm:$0xff]
  %v60 = vlaneseq
  %v61 = vshrl.u32 %v60, 7
  %v62 = vsub.s32 0, %v61
  %v63 = vrot.slane %v47, %v62
  %v64 = vsub.f32 %v59, %v63
  %v65 = vmul.f32 %v64, %v43
  %v66 = vld [vmem:[%s2] sm:$0xff]
  %v67 = vlaneseq
  %v68 = vshrl.u32 %v67, 7
  %v69 = vsub.s32 0, %v68
  %v70 = vrot.slane %v49, %v69
  %v71 = vsub.f32 %v66, %v70
  %v72 = vmul.f32 %v71, %v43
  %v73 = vld [vmem:[%s3] sm:$0xff]
  %v74 = vlaneseq
  %v75 = vshrl.u32 %v74, 7
  %v76 = vsub.s32 0, %v75
  %v77 = vrot.slane %v51, %v76
  %v78 = vsub.f32 %v73, %v77
  %v79 = vmul.f32 %v78, %v43
  %v80 = vld [vmem:[#allocation2] sm:$0xff]
  %v81 = vld [vmem:[#allocation2 + $0x8] sm:$0xff]
  %v82 = vld [vmem:[#allocation2 + $0x10] sm:$0xff]
  %v83 = vld [vmem:[#allocation2 + $0x18] sm:$0xff]
  %84 = vxpose.xlu0.b32.start [1/16] %v58, 128
  %85 = vxpose.xlu0.b32.cont [2/16] 0.0, 128
  %86 = vxpose.xlu0.b32.cont [3/16] 0.0, 128
  %87 = vxpose.xlu0.b32.cont [4/16] 0.0, 128
  %88 = vxpose.xlu0.b32.cont [5/16] 0.0, 128
  %89 = vxpose.xlu0.b32.cont [6/16] 0.0, 128
  %90 = vxpose.xlu0.b32.cont [7/16] 0.0, 128
  %91 = vxpose.xlu0.b32.cont [8/16] 0.0, 128
  %92 = vxpose.xlu0.b32.cont [9/16] 0.0, 128
  %93 = vxpose.xlu0.b32.cont [10/16] 0.0, 128
  %94 = vxpose.xlu0.b32.cont [11/16] 0.0, 128
  %95 = vxpose.xlu0.b32.cont [12/16] 0.0, 128
  %96 = vxpose.xlu0.b32.cont [13/16] 0.0, 128
  %97 = vxpose.xlu0.b32.cont [14/16] 0.0, 128
  %98 = vxpose.xlu0.b32.cont [15/16] 0.0, 128
  %99 = vxpose.xlu0.b32.end [16/16] 0.0, 128
  %v100 = vpop.trf.xlu0
  %v101 = vpop.trf.xlu0
  %v102 = vpop.trf.xlu0
  %v103 = vpop.trf.xlu0
  %v104 = vpop.trf.xlu0
  %v105 = vpop.trf.xlu0
  %v106 = vpop.trf.xlu0
  %v107 = vpop.trf.xlu0
  %v108 = vpop.trf.xlu0
  %v109 = vpop.trf.xlu0
  %v110 = vpop.trf.xlu0
  %v111 = vpop.trf.xlu0
  %v112 = vpop.trf.xlu0
  %v113 = vpop.trf.xlu0
  %v114 = vpop.trf.xlu0
  %v115 = vpop.trf.xlu0
  %vm116 = vcmask 64512
  %v118 = vsel %vm116, %v100, 0
  %v121 = vsel %vm116, %v101, 0
  %v124 = vsel %vm116, %v102, 0
  %v127 = vsel %vm116, %v103, 0
  %129 = vmatprep.subr.mxu0 0.0
  %130 = vmatpush1.msra.mxu0 %v65
  %131 = vmatprep.subr.mxu0 0.0
  %132 = vmatpush1.msra.mxu0 0.0
  %133 = vmatprep.subr.mxu0 0.0
  %134 = vmatpush1.msra.mxu0 0.0
  %135 = vmatprep.subr.mxu0 0.0
  %136 = vmatpush1.msra.mxu0 0.0
  %137 = vmatprep.subr.mxu0 0.0
  %138 = vmatpush1.msra.mxu0 0.0
  %139 = vmatprep.subr.mxu0 0.0
  %140 = vmatpush1.msra.mxu0 0.0
  %141 = vmatprep.subr.mxu0 0.0
  %142 = vmatpush1.msra.mxu0 0.0
  %143 = vmatprep.subr.mxu0 0.0
  %144 = vmatpush1.msra.mxu0 0.0
  %145 = vmatprep.subr.mxu0 0.0
  %146 = vmatpush1.msra.mxu0 0.0
  %147 = vmatprep.subr.mxu0 0.0
  %148 = vmatpush1.msra.mxu0 0.0
  %149 = vmatprep.subr.mxu0 0.0
  %150 = vmatpush1.msra.mxu0 0.0
  %151 = vmatprep.subr.mxu0 0.0
  %152 = vmatpush1.msra.mxu0 0.0
  %153 = vmatprep.subr.mxu0 0.0
  %154 = vmatpush1.msra.mxu0 0.0
  %155 = vmatprep.subr.mxu0 0.0
  %156 = vmatpush1.msra.mxu0 0.0
  %157 = vmatprep.subr.mxu0 0.0
  %158 = vmatpush1.msra.mxu0 0.0
  %159 = vmatprep.subr.mxu0 0.0
  %160 = vmatpush1.msra.mxu0 0.0
  %161 = vmatprep.subr.mxu0 0.0
  %162 = vmatpush1.msra.mxu0 0.0
  %163 = vmatprep.subr.mxu0 0.0
  %164 = vmatpush1.msra.mxu0 0.0
  %165 = vmatprep.subr.mxu0 0.0
  %166 = vmatpush1.msra.mxu0 0.0
  %167 = vmatprep.subr.mxu0 0.0
  %168 = vmatpush1.msra.mxu0 0.0
  %169 = vmatprep.subr.mxu0 0.0
  %170 = vmatpush1.msra.mxu0 0.0
  %171 = vmatprep.subr.mxu0 0.0
  %172 = vmatpush1.msra.mxu0 0.0
  %173 = vmatprep.subr.mxu0 0.0
  %174 = vmatpush1.msra.mxu0 0.0
  %175 = vmatprep.subr.mxu0 0.0
  %176 = vmatpush1.msra.mxu0 0.0
  %177 = vmatprep.subr.mxu0 0.0
  %178 = vmatpush1.msra.mxu0 0.0
  %179 = vmatprep.subr.mxu0 0.0
  %180 = vmatpush1.msra.mxu0 0.0
  %181 = vmatprep.subr.mxu0 0.0
  %182 = vmatpush1.msra.mxu0 0.0
  %183 = vmatprep.subr.mxu0 0.0
  %184 = vmatpush1.msra.mxu0 0.0
  %185 = vmatprep.subr.mxu0 0.0
  %186 = vmatpush1.msra.mxu0 0.0
  %187 = vmatprep.subr.mxu0 0.0
  %188 = vmatpush1.msra.mxu0 0.0
  %189 = vmatprep.subr.mxu0 0.0
  %190 = vmatpush1.msra.mxu0 0.0
  %191 = vmatprep.subr.mxu0 0.0
  %192 = vmatpush1.msra.mxu0 0.0
  %193 = vmatprep.mubr.f32.mxu0 0.0
  %194 = vmatmul.mubr.f32.gmra.mrb[0].mxu0 %v118
  %v195 = vpop.f32.mrb[0].mxu0
  %v196 = vadd.f32 0.0, %v195
  %v197 = vpop.f32.mrb[0].mxu0
  %198 = vmatprep.mubr.f32.mxu0 0.0
  %199 = vmatmul.mubr.f32.gmra.mrb[0].mxu0 %v121
  %v200 = vpop.f32.mrb[0].mxu0
  %v201 = vadd.f32 0.0, %v200
  %v202 = vpop.f32.mrb[0].mxu0
  %203 = vmatprep.mubr.f32.mxu0 0.0
  %204 = vmatmul.mubr.f32.gmra.mrb[0].mxu0 %v124
  %v205 = vpop.f32.mrb[0].mxu0
  %v206 = vadd.f32 0.0, %v205
  %v207 = vpop.f32.mrb[0].mxu0
  %208 = vmatprep.mubr.f32.mxu0 0.0
  %209 = vmatmul.mubr.f32.gmra.mrb[0].mxu0 %v127
  %v210 = vpop.f32.mrb[0].mxu0
  %v211 = vadd.f32 0.0, %v210
  %v212 = vpop.f32.mrb[0].mxu0
  %213 = vdwg.mxu0
  %v214 = vadd.f32 %v80, %v196
  %v215 = vadd.f32 %v81, %v201
  %v216 = vadd.f32 %v82, %v206
  %v217 = vadd.f32 %v83, %v211
  %vm218 = vcmask 261120
  %219 = vst.msk [vmem:[#allocation2] sm:$0xff] %vm218, %v214
  %220 = vst.msk [vmem:[#allocation2 + $0x8] sm:$0xff] %vm218, %v215
  %221 = vst.msk [vmem:[#allocation2 + $0x10] sm:$0xff] %vm218, %v216
  %222 = vst.msk [vmem:[#allocation2 + $0x18] sm:$0xff] %vm218, %v217
  %v223 = vld [vmem:[#allocation3] sm:$0xff]
  %v224 = vld [vmem:[#allocation3 + $0x8] sm:$0xff]
  %v225 = vld [vmem:[#allocation3 + $0x10] sm:$0xff]
  %v226 = vld [vmem:[#allocation3 + $0x18] sm:$0xff]
  %227 = vxpose.xlu0.b32.start [1/16] %v72, 128
  %228 = vxpose.xlu0.b32.cont [2/16] 0.0, 128
  %229 = vxpose.xlu0.b32.cont [3/16] 0.0, 128
  %230 = vxpose.xlu0.b32.cont [4/16] 0.0, 128
  %231 = vxpose.xlu0.b32.cont [5/16] 0.0, 128
  %232 = vxpose.xlu0.b32.cont [6/16] 0.0, 128
  %233 = vxpose.xlu0.b32.cont [7/16] 0.0, 128
  %234 = vxpose.xlu0.b32.cont [8/16] 0.0, 128
  %235 = vxpose.xlu0.b32.cont [9/16] 0.0, 128
  %236 = vxpose.xlu0.b32.cont [10/16] 0.0, 128
  %237 = vxpose.xlu0.b32.cont [11/16] 0.0, 128
  %238 = vxpose.xlu0.b32.cont [12/16] 0.0, 128
  %239 = vxpose.xlu0.b32.cont [13/16] 0.0, 128
  %240 = vxpose.xlu0.b32.cont [14/16] 0.0, 128
  %241 = vxpose.xlu0.b32.cont [15/16] 0.0, 128
  %242 = vxpose.xlu0.b32.end [16/16] 0.0, 128
  %v243 = vpop.trf.xlu0
  %v244 = vpop.trf.xlu0
  %v245 = vpop.trf.xlu0
  %v246 = vpop.trf.xlu0
  %v247 = vpop.trf.xlu0
  %v248 = vpop.trf.xlu0
  %v249 = vpop.trf.xlu0
  %v250 = vpop.trf.xlu0
  %v251 = vpop.trf.xlu0
  %v252 = vpop.trf.xlu0
  %v253 = vpop.trf.xlu0
  %v254 = vpop.trf.xlu0
  %v255 = vpop.trf.xlu0
  %v256 = vpop.trf.xlu0
  %v257 = vpop.trf.xlu0
  %v258 = vpop.trf.xlu0
  %v260 = vsel %vm116, %v243, 0
  %v263 = vsel %vm116, %v244, 0
  %v266 = vsel %vm116, %v245, 0
  %v269 = vsel %vm116, %v246, 0
  %271 = vmatprep.subr.mxu0 0.0
  %272 = vmatpush1.msra.mxu0 %v79
  %273 = vmatprep.subr.mxu0 0.0
  %274 = vmatpush1.msra.mxu0 0.0
  %275 = vmatprep.subr.mxu0 0.0
  %276 = vmatpush1.msra.mxu0 0.0
  %277 = vmatprep.subr.mxu0 0.0
  %278 = vmatpush1.msra.mxu0 0.0
  %279 = vmatprep.subr.mxu0 0.0
  %280 = vmatpush1.msra.mxu0 0.0
  %281 = vmatprep.subr.mxu0 0.0
  %282 = vmatpush1.msra.mxu0 0.0
  %283 = vmatprep.subr.mxu0 0.0
  %284 = vmatpush1.msra.mxu0 0.0
  %285 = vmatprep.subr.mxu0 0.0
  %286 = vmatpush1.msra.mxu0 0.0
  %287 = vmatprep.subr.mxu0 0.0
  %288 = vmatpush1.msra.mxu0 0.0
  %289 = vmatprep.subr.mxu0 0.0
  %290 = vmatpush1.msra.mxu0 0.0
  %291 = vmatprep.subr.mxu0 0.0
  %292 = vmatpush1.msra.mxu0 0.0
  %293 = vmatprep.subr.mxu0 0.0
  %294 = vmatpush1.msra.mxu0 0.0
  %295 = vmatprep.subr.mxu0 0.0
  %296 = vmatpush1.msra.mxu0 0.0
  %297 = vmatprep.subr.mxu0 0.0
  %298 = vmatpush1.msra.mxu0 0.0
  %299 = vmatprep.subr.mxu0 0.0
  %300 = vmatpush1.msra.mxu0 0.0
  %301 = vmatprep.subr.mxu0 0.0
  %302 = vmatpush1.msra.mxu0 0.0
  %303 = vmatprep.subr.mxu0 0.0
  %304 = vmatpush1.msra.mxu0 0.0
  %305 = vmatprep.subr.mxu0 0.0
  %306 = vmatpush1.msra.mxu0 0.0
  %307 = vmatprep.subr.mxu0 0.0
  %308 = vmatpush1.msra.mxu0 0.0
  %309 = vmatprep.subr.mxu0 0.0
  %310 = vmatpush1.msra.mxu0 0.0
  %311 = vmatprep.subr.mxu0 0.0
  %312 = vmatpush1.msra.mxu0 0.0
  %313 = vmatprep.subr.mxu0 0.0
  %314 = vmatpush1.msra.mxu0 0.0
  %315 = vmatprep.subr.mxu0 0.0
  %316 = vmatpush1.msra.mxu0 0.0
  %317 = vmatprep.subr.mxu0 0.0
  %318 = vmatpush1.msra.mxu0 0.0
  %319 = vmatprep.subr.mxu0 0.0
  %320 = vmatpush1.msra.mxu0 0.0
  %321 = vmatprep.subr.mxu0 0.0
  %322 = vmatpush1.msra.mxu0 0.0
  %323 = vmatprep.subr.mxu0 0.0
  %324 = vmatpush1.msra.mxu0 0.0
  %325 = vmatprep.subr.mxu0 0.0
  %326 = vmatpush1.msra.mxu0 0.0
  %327 = vmatprep.subr.mxu0 0.0
  %328 = vmatpush1.msra.mxu0 0.0
  %329 = vmatprep.subr.mxu0 0.0
  %330 = vmatpush1.msra.mxu0 0.0
  %331 = vmatprep.subr.mxu0 0.0
  %332 = vmatpush1.msra.mxu0 0.0
  %333 = vmatprep.subr.mxu0 0.0
  %334 = vmatpush1.msra.mxu0 0.0
  %335 = vmatprep.mubr.f32.mxu0 0.0
  %336 = vmatmul.mubr.f32.gmra.mrb[0].mxu0 %v260
  %v337 = vpop.f32.mrb[0].mxu0
  %v338 = vadd.f32 0.0, %v337
  %v339 = vpop.f32.mrb[0].mxu0
  %340 = vmatprep.mubr.f32.mxu0 0.0
  %341 = vmatmul.mubr.f32.gmra.mrb[0].mxu0 %v263
  %v342 = vpop.f32.mrb[0].mxu0
  %v343 = vadd.f32 0.0, %v342
  %v344 = vpop.f32.mrb[0].mxu0
  %345 = vmatprep.mubr.f32.mxu0 0.0
  %346 = vmatmul.mubr.f32.gmra.mrb[0].mxu0 %v266
  %v347 = vpop.f32.mrb[0].mxu0
  %v348 = vadd.f32 0.0, %v347
  %v349 = vpop.f32.mrb[0].mxu0
  %350 = vmatprep.mubr.f32.mxu0 0.0
  %351 = vmatmul.mubr.f32.gmra.mrb[0].mxu0 %v269
  %v352 = vpop.f32.mrb[0].mxu0
  %v353 = vadd.f32 0.0, %v352
  %v354 = vpop.f32.mrb[0].mxu0
  %355 = vdwg.mxu0
  %v356 = vadd.f32 %v223, %v338
  %v357 = vadd.f32 %v224, %v343
  %v358 = vadd.f32 %v225, %v348
  %v359 = vadd.f32 %v226, %v353
  %360 = vst.msk [vmem:[#allocation3] sm:$0xff] %vm218, %v356
  %361 = vst.msk [vmem:[#allocation3 + $0x8] sm:$0xff] %vm218, %v357
  %362 = vst.msk [vmem:[#allocation3 + $0x10] sm:$0xff] %vm218, %v358
  %363 = vst.msk [vmem:[#allocation3 + $0x18] sm:$0xff] %vm218, %v359
  // Predicated region
  $region30: #{vicreg_loss.3} parent=0 // pred_check
    %p364 = pneg %p23
  $region31: #{vicreg_loss.3} parent=0 // pred_check_branch
    %366 = sbr.rel (%p364) target = $region33
  $region32: #{vicreg_loss.3} parent=0 // pred_region
    %v367 = vld [vmem:[#allocation2] sm:$0xff]
    %v368 = vld [vmem:[#allocation2 + $0x8] sm:$0xff]
    %v369 = vld [vmem:[#allocation2 + $0x10] sm:$0xff]
    %v370 = vld [vmem:[#allocation2 + $0x18] sm:$0xff]
    %v371 = vmul.f32 %v367, %v367
    %v372 = vmul.f32 %v368, %v368
    %v373 = vmul.f32 %v369, %v369
    %v374 = vmul.f32 %v370, %v370
    %v375 = vsel %vm218, %v371, 0.0
    %v376 = vsel %vm218, %v372, 0.0
    %v377 = vadd.f32 %v375, %v376
    %v378 = vsel %vm218, %v373, 0.0
    %v379 = vadd.f32 %v377, %v378
    %v380 = vsel %vm218, %v374, 0.0
    %v381 = vadd.f32 %v379, %v380
    %382 = vadd.xlane.f32.xlu0 %v381
    %v383 = vpop.xlane.xlu0 %382
    %v384 = vrot.slane %v383, 4
    %v385 = vadd.f32 %v383, %v384
    %v386 = vrot.slane %v385, 2
    %v387 = vadd.f32 %v385, %v386
    %v388 = vrot.slane %v387, 1
    %v389 = vadd.f32 %v387, %v388
    %s390 = vtos %v389
    %s391 = smul.f32 %s390, 0.020408163
    %v392 = vld [vmem:[#allocation3] sm:$0xff]
    %v393 = vld [vmem:[#allocation3 + $0x8] sm:$0xff]
    %v394 = vld [vmem:[#allocation3 + $0x10] sm:$0xff]
    %v395 = vld [vmem:[#allocation3 + $0x18] sm:$0xff]
    %v396 = vmul.f32 %v392, %v392
    %v397 = vmul.f32 %v393, %v393
    %v398 = vmul.f32 %v394, %v394
    %v399 = vmul.f32 %v395, %v395
    %v400 = vsel %vm218, %v396, 0.0
    %v401 = vsel %vm218, %v397, 0.0
    %v402 = vadd.f32 %v400, %v401
    %v403 = vsel %vm218, %v398, 0.0
    %v404 = vadd.f32 %v402, %v403
    %v405 = vsel %vm218, %v399, 0.0
    %v406 = vadd.f32 %v404, %v405
    %407 = vadd.xlane.f32.xlu0 %v406
    %v408 = vpop.xlane.xlu0 %407
    %v409 = vrot.slane %v408, 4
    %v410 = vadd.f32 %v408, %v409
    %v411 = vrot.slane %v410, 2
    %v412 = vadd.f32 %v410, %v411
    %v413 = vrot.slane %v412, 1
    %v414 = vadd.f32 %v412, %v413
    %s415 = vtos %v414
    %s416 = smul.f32 %s415, 0.020408163
    %v417 = vlaneseq
    %v418 = vand.u32 %v417, 127
    %vm419 = vcmp.eq.s32.totalorder %v37, 0
    %vm420 = vcmp.eq.s32.totalorder %v418, 0
    %vm421 = vmand %vm419, %vm420
    %vm422 = vcmp.eq.s32.totalorder %v418, 1
    %vm423 = vmand %vm419, %vm422
    %v424 = vstv %s416
    %v425 = vsel %vm423, %v424, 0.0
    %v426 = vstv %s391
    %v427 = vsel %vm421, %v426, %v425
    %428 = vst [vmem:[%s6] sm:$0xff] %v427
  $region33: #{vicreg_loss.3} parent=0 // pred_fallthru
    _
  // Predicated region
  $region34: #{vicreg_loss.3} parent=0 // pred_check
    _
  $region35: #{vicreg_loss.3} parent=0 // pred_check_branch
    %430 = sbr.rel (0) target = $region37
  $region36: #{vicreg_loss.3} parent=0 // pred_region
    _
  $region37: #{vicreg_loss.3} parent=0 // pred_fallthru
    _
  // Predicated region
  $region38: #{vicreg_loss.3} parent=0 // pred_check
    _
  $region39: #{vicreg_loss.3} parent=0 // pred_check_branch
    %432 = sbr.rel (0) target = $region41
  $region40: #{vicreg_loss.3} parent=0 // pred_region
    _
  $region41: #{vicreg_loss.3} parent=0 // pred_fallthru
    _

</llo_original>
